<compile_context>
chip_gen: v7x
topology: tpu7x:2x2x1
jax: 0.10.0
libtpu: 0.0.40
codegen_flags: <defaults>
</compile_context>

<pallas_src>
import jax
import jax.numpy as jnp
from jax.experimental import pallas as pl
from jax.experimental.pallas import tpu as pltpu


def _clip_tokenizer_kernel(x_ref, w_ref, out_ref):
    """Entire forward = one fused block-diagonal projection.

    x_ref:   (rows_per_tile, K_aug)   K_aug = image_dim + text_dim + T
             rows are tokens (batch and token axes pre-flattened in wrapper);
             each row = [img_feat | 0 | onehot(t)] or [0 | txt_feat | onehot(t)].
    w_ref:   (K_aug, out_dim)         out_dim = proj + pos + cat
             rows = [W_img|0], [W_txt|0], and per-token [bias(t) | poscat(t)].
    out_ref: (rows_per_tile, out_dim)
    """
    out_ref[...] = jnp.dot(
        x_ref[...], w_ref[...], preferred_element_type=jnp.float32
    ).astype(out_ref.dtype)


def _default_num_batch_tiles():
    """2 grid steps only when the part exposes 2 TensorCores (v7x); else 1."""
    try:
        return 2 if int(getattr(jax.devices()[0], "num_cores", 1)) >= 2 else 1
    except Exception:
        return 1


def clip_tokenizer_forward(image, text, mask, params, *, num_batch_tiles=None):
    """Pallas implementation of ClipTokenizer.forward (backbone=None path)."""
    B, P2, n_img, image_dim = image.shape
    assert P2 == 2
    _, n_txt, text_dim = text.shape

    w_img = params["image_embedding.weight"]      # (image_dim, proj)
    b_img = params["image_embedding.bias"]        # (proj,)
    w_txt = params["text_embedding.weight"]       # (text_dim, proj)
    b_txt = params["text_embedding.bias"]         # (proj,)
    img_pos = params["image_position_embedding"]  # (n_img, position_dim)
    txt_pos = params["text_position_embedding"]   # (n_txt, position_dim)
    cat_emb = params["category_embedding"]        # (3, category_dim)

    proj = w_img.shape[1]
    pos_dim = img_pos.shape[1]
    cat_dim = cat_emb.shape[1]
    T = 2 * n_img + n_txt
    out_dim = proj + pos_dim + cat_dim
    k_aug = image_dim + text_dim + T
    M = B * T
    f32 = jnp.float32

    # ---- glue (plain JAX, pure parameter rearrangement; runs once per call) ----
    # nn.Embedding lookups with arange indices are identity gathers of weights.
    pos_table = jnp.concatenate([img_pos, img_pos, txt_pos], axis=0)           # (T, pos)
    cat_table = jnp.concatenate(
        [jnp.broadcast_to(cat_emb[0], (n_img, cat_dim)),
         jnp.broadcast_to(cat_emb[1], (n_img, cat_dim)),
         jnp.broadcast_to(cat_emb[2], (n_txt, cat_dim))], axis=0)              # (T, cat)
    poscat = jnp.concatenate([pos_table, cat_table], axis=-1).astype(f32)      # (T, pos+cat)

    # Fused block-diagonal weight with biases and the pos/cat table folded in:
    #   rows [0, image_dim)             -> [W_img | 0]
    #   rows [image_dim, +text_dim)     -> [W_txt | 0]
    #   rows [image_dim+text_dim, +T)   -> row t = [bias(token t) | poscat(token t)]
    w_top = jnp.concatenate(
        [w_img.astype(f32), jnp.zeros((image_dim, pos_dim + cat_dim), f32)], axis=-1)
    w_mid = jnp.concatenate(
        [w_txt.astype(f32), jnp.zeros((text_dim, pos_dim + cat_dim), f32)], axis=-1)
    bias_rows = jnp.concatenate(
        [jnp.broadcast_to(b_img.astype(f32)[None], (2 * n_img, proj)),
         jnp.broadcast_to(b_txt.astype(f32)[None], (n_txt, proj))], axis=0)    # (T, proj)
    w_bot = jnp.concatenate([bias_rows, poscat], axis=-1)                      # (T, out_dim)
    w_cat = jnp.concatenate([w_top, w_mid, w_bot], axis=0)                     # (k_aug, out_dim)

    # Augmented activations: 'b p n c -> b (p n) c' fold, K-block placement of the
    # image/text features, and a per-token one-hot that picks up the bias /
    # position / category rows of w_cat.  All reshapes are wrapper-side (free).
    img_tok = jnp.concatenate(
        [image.reshape(B, 2 * n_img, image_dim).astype(f32),
         jnp.zeros((B, 2 * n_img, text_dim), f32)], axis=-1)                   # (B, 2n, img+txt)
    txt_tok = jnp.concatenate(
        [jnp.zeros((B, n_txt, image_dim), f32), text.astype(f32)], axis=-1)    # (B, nt, img+txt)
    feats = jnp.concatenate([img_tok, txt_tok], axis=1)                        # (B, T, img+txt)
    onehot = jnp.broadcast_to(jnp.eye(T, dtype=f32)[None], (B, T, T))          # (B, T, T)
    x_aug = jnp.concatenate([feats, onehot], axis=-1).reshape(M, k_aug)        # (M, k_aug)

    # ---- grid: 1 step on single-TC v5e/v6e; 2 "parallel" steps on 2-TC v7x ----
    if num_batch_tiles is None:
        num_batch_tiles = _default_num_batch_tiles()
    num_batch_tiles = max(int(num_batch_tiles), 1)
    if M % num_batch_tiles != 0 or (M // num_batch_tiles) % 8 != 0:
        num_batch_tiles = 1                       # keep blocks (8,128)-legal
    rows_per_tile = M // num_batch_tiles

    cost = pl.CostEstimate(
        flops=2 * M * k_aug * out_dim,
        transcendentals=0,
        bytes_accessed=4 * (M * k_aug + k_aug * out_dim + M * out_dim))

    out_flat = pl.pallas_call(
        _clip_tokenizer_kernel,
        out_shape=jax.ShapeDtypeStruct((M, out_dim), f32),
        grid_spec=pltpu.PrefetchScalarGridSpec(
            num_scalar_prefetch=0,
            grid=(num_batch_tiles,),
            in_specs=[
                pl.BlockSpec((rows_per_tile, k_aug), lambda i: (i, 0)),
                # constant index map -> weights stay resident across grid steps
                pl.BlockSpec((k_aug, out_dim), lambda i: (0, 0)),
            ],
            out_specs=pl.BlockSpec((rows_per_tile, out_dim), lambda i: (i, 0)),
        ),
        compiler_params=pltpu.CompilerParams(
            dimension_semantics=("parallel",)),
        cost_estimate=cost,
    )(x_aug, w_cat)

    return dict(embeddings=out_flat.reshape(B, T, out_dim), mask=mask)


def _reference_forward(image, text, mask, params):
    """Plain-JAX reference, mirrors the PyTorch forward exactly."""
    B = text.shape[0]
    n_img = image.shape[2]
    n_txt = text.shape[1]
    w_img = params["image_embedding.weight"]
    b_img = params["image_embedding.bias"]
    w_txt = params["text_embedding.weight"]
    b_txt = params["text_embedding.bias"]
    img_pos = params["image_position_embedding"]
    txt_pos = params["text_position_embedding"]
    cat_emb = params["category_embedding"]

    text_e = text @ w_txt + b_txt                                   # (B, n_txt, P)
    image_e = image @ w_img + b_img                                 # (B, 2, n_img, P)
    stacked = image_e.reshape(B, 2 * n_img, -1)                     # b (p n) c
    emb = jnp.concatenate([stacked, text_e], axis=1)                # (B, T, P)

    pos = jnp.concatenate([img_pos, img_pos, txt_pos], axis=0)      # (T, pos)
    pos = jnp.broadcast_to(pos[None], (B,) + pos.shape)
    cats = jnp.concatenate(
        [jnp.zeros(n_img, jnp.int32), jnp.ones(n_img, jnp.int32),
         jnp.full((n_txt,), 2, jnp.int32)])
    cat = jnp.broadcast_to(cat_emb[cats][None], (B, cats.shape[0], cat_emb.shape[1]))
    out = jnp.concatenate([emb, pos, cat], axis=-1)
    return dict(embeddings=out, mask=mask)


if __name__ == "__main__":
    # Module config (small shapes)
    B = 2
    text_dim = 32
    image_dim = 32
    num_image_tokens = 8
    num_text_tokens = 8
    projection_dim = 32
    position_dim = 16
    category_dim = 16
    T = 2 * num_image_tokens + num_text_tokens
    out_dim = projection_dim + position_dim + category_dim

    key = jax.random.PRNGKey(0)
    keys = jax.random.split(key, 11)

    # Deterministic synthetic parameters (shapes from ClipTokenizer.__init__).
    params = {
        "text_embedding.weight": jax.random.normal(keys[0], (text_dim, projection_dim), jnp.float32) * 0.05,
        "text_embedding.bias": jax.random.normal(keys[1], (projection_dim,), jnp.float32) * 0.05,
        "image_embedding.weight": jax.random.normal(keys[2], (image_dim, projection_dim), jnp.float32) * 0.05,
        "image_embedding.bias": jax.random.normal(keys[3], (projection_dim,), jnp.float32) * 0.05,
        "image_position_embedding": jax.random.normal(keys[4], (num_image_tokens, position_dim), jnp.float32),
        "text_position_embedding": jax.random.normal(keys[5], (num_text_tokens, position_dim), jnp.float32),
        "category_embedding": jax.random.normal(keys[6], (3, category_dim), jnp.float32),
    }

    # Inputs (backbone is None path: data provides image, text, mask directly).
    image = jax.random.normal(keys[7], (B, 2, num_image_tokens, image_dim), jnp.float32)
    text = jax.random.normal(keys[8], (B, num_text_tokens, text_dim), jnp.float32)
    mask = jnp.ones((B, T), dtype=jnp.bool_)

    ref = _reference_forward(image, text, mask, params)

    # Default path: single grid step unless the part has 2 TensorCores.
    out = clip_tokenizer_forward(image, text, mask, params)
    jax.block_until_ready(out["embeddings"])
    assert out["embeddings"].shape == (B, T, out_dim)
    assert jnp.allclose(out["embeddings"], ref["embeddings"], atol=1e-5, rtol=1e-5)
    assert jnp.array_equal(out["mask"], ref["mask"])

    # Coverage test for the 2-tile grid path (v7x-style split) at B >= 4.
    # Runs correctly (just sequentially) on single-TC parts too.
    B4 = 4
    image4 = jax.random.normal(keys[9], (B4, 2, num_image_tokens, image_dim), jnp.float32)
    text4 = jax.random.normal(keys[10], (B4, num_text_tokens, text_dim), jnp.float32)
    mask4 = jnp.ones((B4, T), dtype=jnp.bool_)
    ref4 = _reference_forward(image4, text4, mask4, params)
    out4 = clip_tokenizer_forward(image4, text4, mask4, params, num_batch_tiles=2)
    jax.block_until_ready(out4["embeddings"])
    assert jnp.allclose(out4["embeddings"], ref4["embeddings"], atol=1e-5, rtol=1e-5)
    assert jnp.array_equal(out4["mask"], ref4["mask"])

    print("KERNEL_OK")
</pallas_src>

<mosaic_0001>
module attributes {stable_mosaic.version = 11 : i64} {
  func.func @_clip_tokenizer_kernel(%arg0: i32, %arg1: memref<48x88xf32, #tpu.memory_space<vmem>>, %arg2: memref<88x64xf32, #tpu.memory_space<vmem>>, %arg3: memref<48x64xf32, #tpu.memory_space<vmem>>) attributes {dimension_semantics = [#tpu.dimension_semantics<parallel>], iteration_bounds = array<i64: 1>, scalar_prefetch = 0 : i64, scratch_operands = 0 : i64, tpu.core_type = #tpu.core_type<tc>, window_params = [{transform_indices = @transform_0, window_bounds = array<i64: 48, 88>}, {pipeline_mode = #tpu.pipeline_mode<synchronous>, transform_indices = @transform_1, window_bounds = array<i64: 88, 64>}, {transform_indices = @transform_2, window_bounds = array<i64: 48, 64>}]} {
    %c0 = arith.constant 0 : index
    %c0_0 = arith.constant 0 : index
    %0 = vector.load %arg1[%c0, %c0_0] : memref<48x88xf32, #tpu.memory_space<vmem>>, vector<48x88xf32>
    %c0_1 = arith.constant 0 : index
    %c0_2 = arith.constant 0 : index
    %1 = vector.load %arg2[%c0_1, %c0_2] : memref<88x64xf32, #tpu.memory_space<vmem>>, vector<88x64xf32>
    %cst = arith.constant dense<0.000000e+00> : vector<48x64xf32>
    %2 = tpu.matmul %0, %1, %cst {dimension_numbers = #tpu.dot_dimension_numbers<[1], [0], [0], [1], [0, 0, 1, 1], [], []>} : vector<48x88xf32>, vector<88x64xf32>, vector<48x64xf32> -> vector<48x64xf32>
    %c0_3 = arith.constant 0 : index
    %c0_4 = arith.constant 0 : index
    %3 = vector.load %arg3[%c0_3, %c0_4] : memref<48x64xf32, #tpu.memory_space<vmem>>, vector<48x64xf32>
    tpu.vector_store %arg3[%c0_3, %c0_4], %2 {strides = array<i32>} : memref<48x64xf32, #tpu.memory_space<vmem>>, vector<48x64xf32>,
    return
  }
  func.func @transform_0(%arg0: i32) -> (i32, i32) {
    %c0_i32 = arith.constant 0 : i32
    %c0_i32_0 = arith.constant 0 : i32
    return %arg0, %c0_i32 : i32, i32
  }
  func.func @transform_1(%arg0: i32) -> (i32, i32) {
    %c0_i32 = arith.constant 0 : i32
    %c0_i32_0 = arith.constant 0 : i32
    %c0_i32_1 = arith.constant 0 : i32
    return %c0_i32, %c0_i32_0 : i32, i32
  }
  func.func @transform_2(%arg0: i32) -> (i32, i32) {
    %c0_i32 = arith.constant 0 : i32
    %c0_i32_0 = arith.constant 0 : i32
    return %arg0, %c0_i32 : i32, i32
  }
}

</mosaic_0001>

<llo_original>
// kernel: tpu_custom_call.1
$region0: #{tpu_custom_call.1}
  #allocation0 [shape = 'u32[]', space=smem, size = 0x4, offset = 0x4, fixed_abs, tag = 'smem constant byte address 0x4 - core index']
  #allocation1 [shape = 'u32[144,128]{1,0:T(1,128)}', space=vmem, size = 0x12000, scoped, tag = 'internal scratch']
  %s0 = inlined_call_operand.vmem [shape: f32[48,88], index: 0, kind: input, shape index: {}]
  %s1 = inlined_call_operand.vmem [shape: f32[88,64], index: 1, kind: input, shape index: {}]
  %s2 = inlined_call_operand.hbm [shape: f32[48,64], index: 2, kind: output, shape index: {}]
  %s3 = sld [smem:[#allocation0]]
  $region18: #{tpu_custom_call.1} parent=0
    _
  %s5 = ssub.s32 1, %s3
  %s6 = scalar_select 0, %s5, %s3
  $region1: #{tpu_custom_call.1} parent=0
    #allocation2 [shape = 'u8[24576]{0}', space=vmem, size = 0x6000, scoped, tag = 'output window, operand 0, single buffered']
    #allocation3 [shape = 's32[1]{0}', space=sflag, size = 0x4, scoped, tag = 'scoped memory for tpu_custom_call.1']
    %7 = vsyncpa [#allocation3], 0
    // Predicated region
    $region2: #{tpu_custom_call.1} parent=1 // pred_check
      _
    $region3: #{tpu_custom_call.1} parent=1 // pred_check_branch
      %9 = sbr.rel (0) target = $region5
    $region4: #{tpu_custom_call.1} parent=1 // pred_region
      _
    $region5: #{tpu_custom_call.1} parent=1 // pred_fallthru
      _
    // Predicated region
    $region6: #{tpu_custom_call.1} parent=1 // pred_check
      _
    $region7: #{tpu_custom_call.1} parent=1 // pred_check_branch
      %11 = sbr.rel (0) target = $region9
    $region8: #{tpu_custom_call.1} parent=1 // pred_region
      _
    $region9: #{tpu_custom_call.1} parent=1 // pred_fallthru
      _
    %v12 = vld [vmem:[%s0] sm:$0xff]
    %v13 = vld [vmem:[%s0 + $0x8] sm:$0xff]
    %v14 = vld [vmem:[%s0 + $0x10] sm:$0xff]
    %v15 = vld [vmem:[%s0 + $0x18] sm:$0xff]
    %v16 = vld [vmem:[%s0 + $0x20] sm:$0xff]
    %v17 = vld [vmem:[%s0 + $0x28] sm:$0xff]
    %v18 = vld [vmem:[%s1] sm:$0xff]
    %v19 = vld [vmem:[%s1 + $0x8] sm:$0xff]
    %v20 = vld [vmem:[%s1 + $0x10] sm:$0xff]
    %v21 = vld [vmem:[%s1 + $0x18] sm:$0xff]
    %v22 = vld [vmem:[%s1 + $0x20] sm:$0xff]
    %v23 = vld [vmem:[%s1 + $0x28] sm:$0xff]
    %v24 = vld [vmem:[%s1 + $0x30] sm:$0xff]
    %v25 = vld [vmem:[%s1 + $0x38] sm:$0xff]
    %v26 = vld [vmem:[%s1 + $0x40] sm:$0xff]
    %v27 = vld [vmem:[%s1 + $0x48] sm:$0xff]
    %v28 = vld [vmem:[%s1 + $0x50] sm:$0xff]
    %vm29 = vcmask 719872
    %v31 = vsel %vm29, %v12, 0
    %v34 = vsel %vm29, %v13, 0
    %v37 = vsel %vm29, %v14, 0
    %v40 = vsel %vm29, %v15, 0
    %v43 = vsel %vm29, %v16, 0
    %v46 = vsel %vm29, %v17, 0
    %48 = vmatprep.subr.mxu0 0.0
    %49 = vmatpush1.msra.mxu0 %v18
    %50 = vmatprep.subr.mxu0 0.0
    %51 = vmatpush1.msra.mxu0 %v19
    %52 = vmatprep.subr.mxu0 0.0
    %53 = vmatpush1.msra.mxu0 %v20
    %54 = vmatprep.subr.mxu0 0.0
    %55 = vmatpush1.msra.mxu0 %v21
    %56 = vmatprep.subr.mxu0 0.0
    %57 = vmatpush1.msra.mxu0 %v22
    %58 = vmatprep.subr.mxu0 0.0
    %59 = vmatpush1.msra.mxu0 %v23
    %60 = vmatprep.subr.mxu0 0.0
    %61 = vmatpush1.msra.mxu0 %v24
    %62 = vmatprep.subr.mxu0 0.0
    %63 = vmatpush1.msra.mxu0 %v25
    %64 = vmatprep.subr.mxu0 0.0
    %65 = vmatpush1.msra.mxu0 %v26
    %66 = vmatprep.subr.mxu0 0.0
    %67 = vmatpush1.msra.mxu0 %v27
    %68 = vmatprep.subr.mxu0 0.0
    %69 = vmatpush1.msra.mxu0 %v28
    %70 = vmatprep.subr.mxu0 0.0
    %71 = vmatpush1.msra.mxu0 0.0
    %72 = vmatprep.subr.mxu0 0.0
    %73 = vmatpush1.msra.mxu0 0.0
    %74 = vmatprep.subr.mxu0 0.0
    %75 = vmatpush1.msra.mxu0 0.0
    %76 = vmatprep.subr.mxu0 0.0
    %77 = vmatpush1.msra.mxu0 0.0
    %78 = vmatprep.subr.mxu0 0.0
    %79 = vmatpush1.msra.mxu0 0.0
    %80 = vmatprep.subr.mxu0 0.0
    %81 = vmatpush1.msra.mxu0 0.0
    %82 = vmatprep.subr.mxu0 0.0
    %83 = vmatpush1.msra.mxu0 0.0
    %84 = vmatprep.subr.mxu0 0.0
    %85 = vmatpush1.msra.mxu0 0.0
    %86 = vmatprep.subr.mxu0 0.0
    %87 = vmatpush1.msra.mxu0 0.0
    %88 = vmatprep.subr.mxu0 0.0
    %89 = vmatpush1.msra.mxu0 0.0
    %90 = vmatprep.subr.mxu0 0.0
    %91 = vmatpush1.msra.mxu0 0.0
    %92 = vmatprep.subr.mxu0 0.0
    %93 = vmatpush1.msra.mxu0 0.0
    %94 = vmatprep.subr.mxu0 0.0
    %95 = vmatpush1.msra.mxu0 0.0
    %96 = vmatprep.subr.mxu0 0.0
    %97 = vmatpush1.msra.mxu0 0.0
    %98 = vmatprep.subr.mxu0 0.0
    %99 = vmatpush1.msra.mxu0 0.0
    %100 = vmatprep.subr.mxu0 0.0
    %101 = vmatpush1.msra.mxu0 0.0
    %102 = vmatprep.subr.mxu0 0.0
    %103 = vmatpush1.msra.mxu0 0.0
    %104 = vmatprep.subr.mxu0 0.0
    %105 = vmatpush1.msra.mxu0 0.0
    %106 = vmatprep.subr.mxu0 0.0
    %107 = vmatpush1.msra.mxu0 0.0
    %108 = vmatprep.subr.mxu0 0.0
    %109 = vmatpush1.msra.mxu0 0.0
    %110 = vmatprep.subr.mxu0 0.0
    %111 = vmatpush1.msra.mxu0 0.0
    %112 = vmatprep.mubr.f32.mxu0 0.0
    %113 = vmatmul.mubr.f32.gmra.mrb[0].mxu0 %v31
    %v114 = vpop.f32.mrb[0].mxu0
    %v115 = vadd.f32 0.0, %v114
    %v116 = vpop.f32.mrb[0].mxu0
    %117 = vmatprep.mubr.f32.mxu0 0.0
    %118 = vmatmul.mubr.f32.gmra.mrb[0].mxu0 %v34
    %v119 = vpop.f32.mrb[0].mxu0
    %v120 = vadd.f32 0.0, %v119
    %v121 = vpop.f32.mrb[0].mxu0
    %122 = vmatprep.mubr.f32.mxu0 0.0
    %123 = vmatmul.mubr.f32.gmra.mrb[0].mxu0 %v37
    %v124 = vpop.f32.mrb[0].mxu0
    %v125 = vadd.f32 0.0, %v124
    %v126 = vpop.f32.mrb[0].mxu0
    %127 = vmatprep.mubr.f32.mxu0 0.0
    %128 = vmatmul.mubr.f32.gmra.mrb[0].mxu0 %v40
    %v129 = vpop.f32.mrb[0].mxu0
    %v130 = vadd.f32 0.0, %v129
    %v131 = vpop.f32.mrb[0].mxu0
    %132 = vmatprep.mubr.f32.mxu0 0.0
    %133 = vmatmul.mubr.f32.gmra.mrb[0].mxu0 %v43
    %v134 = vpop.f32.mrb[0].mxu0
    %v135 = vadd.f32 0.0, %v134
    %v136 = vpop.f32.mrb[0].mxu0
    %137 = vmatprep.mubr.f32.mxu0 0.0
    %138 = vmatmul.mubr.f32.gmra.mrb[0].mxu0 %v46
    %v139 = vpop.f32.mrb[0].mxu0
    %v140 = vadd.f32 0.0, %v139
    %v141 = vpop.f32.mrb[0].mxu0
    %142 = vdwg.mxu0
    %vm143 = vcmask 523264
    %144 = vst.msk [vmem:[#allocation2] sm:$0xff] %vm143, %v115
    %145 = vst.msk [vmem:[#allocation2 + $0x8] sm:$0xff] %vm143, %v120
    %146 = vst.msk [vmem:[#allocation2 + $0x10] sm:$0xff] %vm143, %v125
    %147 = vst.msk [vmem:[#allocation2 + $0x18] sm:$0xff] %vm143, %v130
    %148 = vst.msk [vmem:[#allocation2 + $0x20] sm:$0xff] %vm143, %v135
    %149 = vst.msk [vmem:[#allocation2 + $0x28] sm:$0xff] %vm143, %v140
    // Predicated region
    $region10: #{tpu_custom_call.1} parent=1 // pred_check
      _
    $region11: #{tpu_custom_call.1} parent=1 // pred_check_branch
      %151 = sbr.rel (0) target = $region13
    $region12: #{tpu_custom_call.1} parent=1 // pred_region
      %s153 = ssub.s32 768, 768
      %154 = vsyncadd [#allocation3], %s153
      %s155 = sshll.u32 [#allocation2], 4
      %s156 = int_to_ptr.vmem [resolvable:$true] %s155
      %161 = dma.vmem_to_hbm [thread:$0]  %s156, 768, %s2, [#allocation3], 128, 128, 8
    $region13: #{tpu_custom_call.1} parent=1 // pred_fallthru
      _
    // Predicated region
    $region14: #{tpu_custom_call.1} parent=1 // pred_check
      _
    $region15: #{tpu_custom_call.1} parent=1 // pred_check_branch
      %163 = sbr.rel (0) target = $region17
    $region16: #{tpu_custom_call.1} parent=1 // pred_region
      %164 = dma.done [#allocation3], 768
    $region17: #{tpu_custom_call.1} parent=1 // pred_fallthru
      _
    %165 = vsyncpa [#allocation3], 1

</llo_original>
